<compile_context>
chip_gen: v5e
topology: v5e:2x2
jax: 0.10.0
libtpu: 0.0.40
codegen_flags: <defaults>
</compile_context>

<pallas_src>
import functools

import jax
import jax.numpy as jnp
from jax.experimental import pallas as pl
from jax.experimental.pallas import tpu as pltpu

_LANE = 512            # lane width of every block (multiple of 128)
_MAX_BLOCK_ROWS = 1024  # rows per block; 1024x512 f32 = 2 MiB per input buffer
_NUM_CORES = 2         # leading 'parallel' axis (v7x megacore); harmless elsewhere

# Padding values for the flattened (logit, label) streams.  With x = +1e4 and
# y = 1 the per-element loss term is exactly zero:
#   log_p = -log1p(exp(-1e4)) = 0,  p = 1,  (1 - p) = 0  -> first term  = 0
#   log_q = log_p - x = -1e4,       (1 - y) = 0           -> second term = 0
# so padded elements need no in-kernel mask.
_PAD_LOGIT = 1.0e4
_PAD_LABEL = 1


def _rc_loss_kernel(x_ref, y_ref, o_ref, acc_ref, *, inv_batch):
    i = pl.program_id(1)  # reduction ("arbitrary") axis

    @pl.when(i == 0)
    def _init():
        acc_ref[...] = jnp.zeros_like(acc_ref)

    x = x_ref[...].astype(jnp.float32)   # (block_rows, LANE) logits
    y = y_ref[...].astype(jnp.float32)   # (block_rows, LANE) labels

    # Numerically stable log(sigmoid(x)) and log(1 - sigmoid(x)) from logits.
    log_p = jnp.minimum(x, 0.0) - jnp.log1p(jnp.exp(-jnp.abs(x)))  # log(p)
    log_q = log_p - x                                              # log(1 - p)
    p = jnp.exp(log_p)                                             # sigmoid(x)

    # fpcls terms: -2*(1-p)*y*log(p) - p*(1-y)*log(1-p).  Pure elementwise
    # accumulation into the block-shaped VMEM scratch (no per-step reduce).
    acc_ref[...] += -2.0 * (1.0 - p) * y * log_p - p * (1.0 - y) * log_q

    @pl.when(i == pl.num_programs(1) - 1)
    def _finalize():
        # Single cross-lane/sublane reduction + 1/batch scale per partial.
        o_ref[...] = jnp.sum(acc_ref[...], keepdims=True) * inv_batch


def rc_loss(output, labels):
    """Pallas implementation of RCLoss.forward -> scalar fpcls."""
    b = output.shape[0]
    # First logit column + labels, flattened, kept in their native dtype
    # (upcast to f32 happens inside the kernel).  Callers may ship bf16/int8
    # here to halve HBM traffic on memory-bound chips.
    x = output[:, 0].reshape(-1)
    y = labels.reshape(-1)

    rows = pl.cdiv(b, _LANE)
    block_rows = min(_MAX_BLOCK_ROWS, pl.cdiv(rows, 8) * 8)  # multiple of 8
    n_blocks = pl.cdiv(rows, block_rows)
    n_p = _NUM_CORES if n_blocks >= _NUM_CORES else 1        # parallel axis
    n_i = pl.cdiv(n_blocks, n_p)                             # reduction axis
    padded_rows = n_p * n_i * block_rows
    pad = padded_rows * _LANE - b

    # Slice + pad + reshape fuse into a single host-side copy; padded elements
    # contribute exactly zero to the loss (see _PAD_LOGIT / _PAD_LABEL).
    x_p = jnp.pad(x, (0, pad), constant_values=_PAD_LOGIT).reshape(
        padded_rows, _LANE)
    y_p = jnp.pad(y, (0, pad), constant_values=_PAD_LABEL).reshape(
        padded_rows, _LANE)

    partials = pl.pallas_call(
        functools.partial(_rc_loss_kernel, inv_batch=1.0 / b),
        out_shape=jax.ShapeDtypeStruct((n_p, 1), jnp.float32),
        grid_spec=pltpu.PrefetchScalarGridSpec(
            num_scalar_prefetch=0,
            grid=(n_p, n_i),
            in_specs=[
                pl.BlockSpec((block_rows, _LANE), lambda p, i: (p * n_i + i, 0)),
                pl.BlockSpec((block_rows, _LANE), lambda p, i: (p * n_i + i, 0)),
            ],
            out_specs=pl.BlockSpec((1, 1), lambda p, i: (p, 0)),
            scratch_shapes=[pltpu.VMEM((block_rows, _LANE), jnp.float32)],
        ),
        compiler_params=pltpu.CompilerParams(
            dimension_semantics=("parallel", "arbitrary")),
    )(x_p, y_p)
    return jnp.sum(partials)


def _reference(output, labels):
    """Pure-JAX replica of the PyTorch forward (for verification)."""
    x = output[:, 0:1].astype(jnp.float32)
    y = labels.reshape(-1, 1).astype(jnp.float32)
    p = jax.nn.sigmoid(x)
    pos_loss = y * jnp.log(p)
    neg_loss = (1.0 - y) * jnp.log(1.0 - p)
    h_pos = (1.0 - p) * pos_loss
    h_neg = p * neg_loss
    return -2.0 * jnp.mean(h_pos) - jnp.mean(h_neg)
    # TODO(synk): the PyTorch `if fpcls.item() is np.nan: pdb.set_trace()` debug
    # hook has no kernel equivalent (and is a no-op: `is np.nan` is never True).


if __name__ == "__main__":
    key = jax.random.PRNGKey(0)
    k1, k2 = jax.random.split(key)
    B, C = 8, 4
    output = jax.random.normal(k1, (B, C), dtype=jnp.float32)
    labels = (jax.random.uniform(k2, (B, 1)) > 0.5).astype(jnp.float32)

    fpcls = rc_loss(output, labels)
    jax.block_until_ready(fpcls)

    ref = _reference(output, labels)
    assert jnp.allclose(fpcls, ref, atol=1e-5, rtol=1e-5), (fpcls, ref)
    print("KERNEL_OK")
</pallas_src>

<mosaic_0001>
module attributes {stable_mosaic.version = 11 : i64} {
  func.func @_rc_loss_kernel(%arg0: i32, %arg1: i32, %arg2: memref<8x512xf32, #tpu.memory_space<vmem>>, %arg3: memref<8x512xf32, #tpu.memory_space<vmem>>, %arg4: memref<1x1xf32, #tpu.memory_space<vmem>>, %arg5: memref<8x512xf32, #tpu.memory_space<vmem>>) attributes {dimension_semantics = [#tpu.dimension_semantics<parallel>, #tpu.dimension_semantics<arbitrary>], iteration_bounds = array<i64: 1, 1>, scalar_prefetch = 0 : i64, scratch_operands = 1 : i64, tpu.core_type = #tpu.core_type<tc>, window_params = [{transform_indices = @transform_0, window_bounds = array<i64: 8, 512>}, {transform_indices = @transform_1, window_bounds = array<i64: 8, 512>}, {transform_indices = @transform_2, window_bounds = array<i64: 1, 1>}]} {
    %c0_i32 = arith.constant 0 : i32
    %0 = arith.cmpi eq, %arg1, %c0_i32 : i32
    %1 = arith.extui %0 : i1 to i32
    %c0_i32_0 = arith.constant 0 : i32
    %2 = arith.cmpi ne, %1, %c0_i32_0 : i32
    scf.if %2 {
      %cst_14 = arith.constant 0.000000e+00 : f32
      %32 = vector.broadcast %cst_14 : f32 to vector<8x512xf32>
      %c0_15 = arith.constant 0 : index
      %c0_16 = arith.constant 0 : index
      %33 = vector.load %arg5[%c0_15, %c0_16] : memref<8x512xf32, #tpu.memory_space<vmem>>, vector<8x512xf32>
      tpu.vector_store %arg5[%c0_15, %c0_16], %32 {strides = array<i32>} : memref<8x512xf32, #tpu.memory_space<vmem>>, vector<8x512xf32>,
    } else {
    }
    %c0 = arith.constant 0 : index
    %c0_1 = arith.constant 0 : index
    %3 = vector.load %arg2[%c0, %c0_1] : memref<8x512xf32, #tpu.memory_space<vmem>>, vector<8x512xf32>
    %c0_2 = arith.constant 0 : index
    %c0_3 = arith.constant 0 : index
    %4 = vector.load %arg3[%c0_2, %c0_3] : memref<8x512xf32, #tpu.memory_space<vmem>>, vector<8x512xf32>
    %cst = arith.constant 0.000000e+00 : f32
    %5 = vector.broadcast %cst : f32 to vector<8x512xf32>
    %6 = arith.minimumf %3, %5 : vector<8x512xf32>
    %7 = math.absf %3 : vector<8x512xf32>
    %cst_4 = arith.constant 0.000000e+00 : f32
    %8 = vector.broadcast %cst_4 : f32 to vector<8x512xf32>
    %9 = arith.subf %8, %7 : vector<8x512xf32>
    %10 = math.exp %9 : vector<8x512xf32>
    %11 = math.log1p %10 : vector<8x512xf32>
    %12 = arith.subf %6, %11 : vector<8x512xf32>
    %13 = arith.subf %12, %3 : vector<8x512xf32>
    %14 = math.exp %12 : vector<8x512xf32>
    %c0_5 = arith.constant 0 : index
    %c0_6 = arith.constant 0 : index
    %15 = vector.load %arg5[%c0_5, %c0_6] : memref<8x512xf32, #tpu.memory_space<vmem>>, vector<8x512xf32>
    %cst_7 = arith.constant 1.000000e+00 : f32
    %16 = vector.broadcast %cst_7 : f32 to vector<8x512xf32>
    %17 = arith.subf %16, %14 : vector<8x512xf32>
    %cst_8 = arith.constant -2.000000e+00 : f32
    %18 = vector.broadcast %cst_8 : f32 to vector<8x512xf32>
    %19 = arith.mulf %18, %17 : vector<8x512xf32>
    %20 = arith.mulf %19, %4 : vector<8x512xf32>
    %21 = arith.mulf %20, %12 : vector<8x512xf32>
    %cst_9 = arith.constant 1.000000e+00 : f32
    %22 = vector.broadcast %cst_9 : f32 to vector<8x512xf32>
    %23 = arith.subf %22, %4 : vector<8x512xf32>
    %24 = arith.mulf %14, %23 : vector<8x512xf32>
    %25 = arith.mulf %24, %13 : vector<8x512xf32>
    %26 = arith.subf %21, %25 : vector<8x512xf32>
    %27 = arith.addf %15, %26 : vector<8x512xf32>
    %c0_10 = arith.constant 0 : index
    %c0_11 = arith.constant 0 : index
    %28 = vector.load %arg5[%c0_10, %c0_11] : memref<8x512xf32, #tpu.memory_space<vmem>>, vector<8x512xf32>
    tpu.vector_store %arg5[%c0_10, %c0_11], %27 {strides = array<i32>} : memref<8x512xf32, #tpu.memory_space<vmem>>, vector<8x512xf32>,
    %c0_i32_12 = arith.constant 0 : i32
    %29 = arith.cmpi eq, %arg1, %c0_i32_12 : i32
    %30 = arith.extui %29 : i1 to i32
    %c0_i32_13 = arith.constant 0 : i32
    %31 = arith.cmpi ne, %30, %c0_i32_13 : i32
    scf.if %31 {
      %c0_14 = arith.constant 0 : index
      %c0_15 = arith.constant 0 : index
      %32 = vector.load %arg5[%c0_14, %c0_15] : memref<8x512xf32, #tpu.memory_space<vmem>>, vector<8x512xf32>
      %33 = vector.shape_cast %32 : vector<8x512xf32> to vector<1x8x512xf32>
      %cst_16 = arith.constant dense<0.000000e+00> : vector<1xf32>
      %34 = vector.multi_reduction <add>, %33, %cst_16 [1, 2] : vector<1x8x512xf32> to vector<1xf32>
      %35 = vector.shape_cast %34 : vector<1xf32> to vector<1x1x1xf32>
      %36 = vector.extract %35[0, 0, 0] : f32 from vector<1x1x1xf32>
      %37 = vector.broadcast %36 : f32 to vector<1x1xf32>
      %cst_17 = arith.constant 1.250000e-01 : f32
      %38 = vector.broadcast %cst_17 : f32 to vector<1x1xf32>
      %39 = arith.mulf %37, %38 : vector<1x1xf32>
      %c0_18 = arith.constant 0 : index
      %c0_19 = arith.constant 0 : index
      %40 = vector.load %arg4[%c0_18, %c0_19] : memref<1x1xf32, #tpu.memory_space<vmem>>, vector<1x1xf32>
      tpu.vector_store %arg4[%c0_18, %c0_19], %39 {strides = array<i32>} : memref<1x1xf32, #tpu.memory_space<vmem>>, vector<1x1xf32>,
    } else {
    }
    return
  }
  func.func @transform_0(%arg0: i32, %arg1: i32) -> (i32, i32) {
    %c1_i32 = arith.constant 1 : i32
    %0 = arith.muli %arg0, %c1_i32 : i32
    %1 = arith.addi %0, %arg1 : i32
    %c0_i32 = arith.constant 0 : i32
    %c0_i32_0 = arith.constant 0 : i32
    return %1, %c0_i32 : i32, i32
  }
  func.func @transform_1(%arg0: i32, %arg1: i32) -> (i32, i32) {
    %c1_i32 = arith.constant 1 : i32
    %0 = arith.muli %arg0, %c1_i32 : i32
    %1 = arith.addi %0, %arg1 : i32
    %c0_i32 = arith.constant 0 : i32
    %c0_i32_0 = arith.constant 0 : i32
    return %1, %c0_i32 : i32, i32
  }
  func.func @transform_2(%arg0: i32, %arg1: i32) -> (i32, i32) {
    %c0_i32 = arith.constant 0 : i32
    %c0_i32_0 = arith.constant 0 : i32
    return %arg0, %c0_i32 : i32, i32
  }
}

</mosaic_0001>

<llo_original>
// kernel: tpu_custom_call.1
$region0: #{tpu_custom_call.1}
  #allocation0 [shape = 'u32[]', space=smem, size = 0x4, offset = 0x4, fixed_abs, tag = 'smem constant byte address 0x4 - core index']
  #allocation1 [shape = 'u32[72,128]{1,0:T(1,128)}', space=vmem, size = 0x9000, scoped, tag = 'internal scratch']
  #allocation2 [shape = 'f32[8,512]{1,0:T(8,128)}', space=vmem, size = 0x4000, scoped, tag = 'scratch operand']
  %s0 = inlined_call_operand.hbm [shape: f32[8,512], index: 0, kind: input, shape index: {}]
  %s1 = inlined_call_operand.hbm [shape: f32[8,512], index: 1, kind: input, shape index: {}]
  %s2 = inlined_call_operand.hbm [shape: f32[1,1], index: 2, kind: output, shape index: {}]
  %s3 = sld [smem:[#allocation0]]
  $region34: #{tpu_custom_call.1} parent=0
    _
  %s5 = ssub.s32 1, %s3
  %s6 = scalar_select 0, %s5, %s3
  $region1: #{tpu_custom_call.1} parent=0
    #allocation3 [shape = 'u8[16384]{0}', space=vmem, size = 0x4000, scoped, tag = 'input window, operand 0, single buffered']
    #allocation4 [shape = 's32[1]{0}', space=sflag, size = 0x4, scoped, tag = 'scoped memory for tpu_custom_call.1']
    #allocation5 [shape = 's32[1]{0}', space=sflag, size = 0x4, scoped, tag = 'scoped memory for tpu_custom_call.1']
    #allocation6 [shape = 'u8[16384]{0}', space=vmem, size = 0x4000, scoped, tag = 'input window, operand 1, single buffered']
    #allocation7 [shape = 's32[1]{0}', space=sflag, size = 0x4, scoped, tag = 'scoped memory for tpu_custom_call.1']
    #allocation8 [shape = 'u8[512]{0}', space=vmem, size = 0x400, scoped, tag = 'output window, operand 0, single buffered']
    %7 = vsyncpa [#allocation4], 0
    %8 = vsyncpa [#allocation7], 0
    %9 = vsyncpa [#allocation5], 0
    // Predicated region
    $region2: #{tpu_custom_call.1} parent=1 // pred_check
      _
    $region3: #{tpu_custom_call.1} parent=1 // pred_check_branch
      %11 = sbr.rel (0) target = $region5
    $region4: #{tpu_custom_call.1} parent=1 // pred_region
      %s12 = sadd.s32 0, 0
      %14 = vsyncadd [#allocation4], 0
      %s15 = smul.addr %s12, 4
      %s16 = smul.addr %s15, 8
      %s17 = scalar_lea.hbm %s0, %s16
      %s19 = sshll.u32 %s17, 4
      %s20 = int_to_ptr.hbm [resolvable:$true] %s19
      %s21 = sshll.u32 [#allocation3], 4
      %s22 = int_to_ptr.vmem [resolvable:$true] %s21
      %24 = dma.hbm_to_vmem [thread:$0]  %s20, 512, %s22, [#allocation4]
    $region5: #{tpu_custom_call.1} parent=1 // pred_fallthru
      _
    // Predicated region
    $region6: #{tpu_custom_call.1} parent=1 // pred_check
      _
    $region7: #{tpu_custom_call.1} parent=1 // pred_check_branch
      %26 = sbr.rel (0) target = $region9
    $region8: #{tpu_custom_call.1} parent=1 // pred_region
      %s27 = sadd.s32 0, 0
      %29 = vsyncadd [#allocation7], 0
      %s30 = smul.addr %s27, 4
      %s31 = smul.addr %s30, 8
      %s32 = scalar_lea.hbm %s1, %s31
      %s34 = sshll.u32 %s32, 4
      %s35 = int_to_ptr.hbm [resolvable:$true] %s34
      %s36 = sshll.u32 [#allocation6], 4
      %s37 = int_to_ptr.vmem [resolvable:$true] %s36
      %39 = dma.hbm_to_vmem [thread:$0]  %s35, 512, %s37, [#allocation7]
    $region9: #{tpu_custom_call.1} parent=1 // pred_fallthru
      _
    // Predicated region
    $region10: #{tpu_custom_call.1} parent=1 // pred_check
      _
    $region11: #{tpu_custom_call.1} parent=1 // pred_check_branch
      %41 = sbr.rel (0) target = $region13
    $region12: #{tpu_custom_call.1} parent=1 // pred_region
      %43 = dma.done [#allocation4], 512
    $region13: #{tpu_custom_call.1} parent=1 // pred_fallthru
      _
    // Predicated region
    $region14: #{tpu_custom_call.1} parent=1 // pred_check
      _
    $region15: #{tpu_custom_call.1} parent=1 // pred_check_branch
      %45 = sbr.rel (0) target = $region17
    $region16: #{tpu_custom_call.1} parent=1 // pred_region
      %47 = dma.done [#allocation7], 512
    $region17: #{tpu_custom_call.1} parent=1 // pred_fallthru
      _
    %s48 = sadd.s32 0, 0
    %s49 = sadd.s32 0, 0
    %p50 = scmp.eq.s32.totalorder 0, 0
    // Predicated region
    $region18: #{tpu_custom_call.1} parent=1 // pred_check
      %p51 = pneg %p50
    $region19: #{tpu_custom_call.1} parent=1 // pred_check_branch
      %53 = sbr.rel (%p51) target = $region21
    $region20: #{tpu_custom_call.1} parent=1 // pred_region
      %54 = vst [vmem:[#allocation2] sm:$0xff] 0.0
      %55 = vst [vmem:[#allocation2 + $0x8] sm:$0xff] 0.0
      %56 = vst [vmem:[#allocation2 + $0x10] sm:$0xff] 0.0
      %57 = vst [vmem:[#allocation2 + $0x18] sm:$0xff] 0.0
    $region21: #{tpu_custom_call.1} parent=1 // pred_fallthru
      _
    %v58 = vld [vmem:[#allocation3] sm:$0xff]
    %v59 = vld [vmem:[#allocation3 + $0x8] sm:$0xff]
    %v60 = vld [vmem:[#allocation3 + $0x10] sm:$0xff]
    %v61 = vld [vmem:[#allocation3 + $0x18] sm:$0xff]
    %v62 = vld [vmem:[#allocation6] sm:$0xff]
    %v63 = vld [vmem:[#allocation6 + $0x8] sm:$0xff]
    %v64 = vld [vmem:[#allocation6 + $0x10] sm:$0xff]
    %v65 = vld [vmem:[#allocation6 + $0x18] sm:$0xff]
    %v66 = vmin.f32 %v58, 0.0
    %v67 = vmin.f32 %v59, 0.0
    %v68 = vmin.f32 %v60, 0.0
    %v69 = vmin.f32 %v61, 0.0
    %v70 = vand.u32 2147483647, %v58
    %v71 = vand.u32 2147483647, %v59
    %v72 = vand.u32 2147483647, %v60
    %v73 = vand.u32 2147483647, %v61
    %v74 = vsub.f32 0.0, %v70
    %v75 = vsub.f32 0.0, %v71
    %v76 = vsub.f32 0.0, %v72
    %v77 = vsub.f32 0.0, %v73
    %v78 = vmul.f32 %v74, 1.442695
    %v79 = vpow.pop %v78
    %v80 = vmul.f32 %v75, 1.442695
    %v81 = vpow.pop %v80
    %v82 = vmul.f32 %v76, 1.442695
    %v83 = vpow.pop %v82
    %v84 = vmul.f32 %v77, 1.442695
    %v85 = vpow.pop %v84
    %v86 = vadd.f32 %v79, 1.0
    %v87 = vlog2.pop %v86
    %v88 = vmul.f32 %v87, 0.6931472
    %v89 = vmul.f32 -0.5, %v79
    %v90 = vadd.f32 %v89, 1.0
    %v91 = vmul.f32 %v90, %v79
    %v92 = vand.u32 2147483647, %v79
    %vm93 = vcmp.lt.f32.partialorder %v92, 0.0004427343
    %v94 = vsel %vm93, %v91, %v88
    %v95 = vadd.f32 %v81, 1.0
    %v96 = vlog2.pop %v95
    %v97 = vmul.f32 %v96, 0.6931472
    %v98 = vmul.f32 -0.5, %v81
    %v99 = vadd.f32 %v98, 1.0
    %v100 = vmul.f32 %v99, %v81
    %v101 = vand.u32 2147483647, %v81
    %vm102 = vcmp.lt.f32.partialorder %v101, 0.0004427343
    %v103 = vsel %vm102, %v100, %v97
    %v104 = vadd.f32 %v83, 1.0
    %v105 = vlog2.pop %v104
    %v106 = vmul.f32 %v105, 0.6931472
    %v107 = vmul.f32 -0.5, %v83
    %v108 = vadd.f32 %v107, 1.0
    %v109 = vmul.f32 %v108, %v83
    %v110 = vand.u32 2147483647, %v83
    %vm111 = vcmp.lt.f32.partialorder %v110, 0.0004427343
    %v112 = vsel %vm111, %v109, %v106
    %v113 = vadd.f32 %v85, 1.0
    %v114 = vlog2.pop %v113
    %v115 = vmul.f32 %v114, 0.6931472
    %v116 = vmul.f32 -0.5, %v85
    %v117 = vadd.f32 %v116, 1.0
    %v118 = vmul.f32 %v117, %v85
    %v119 = vand.u32 2147483647, %v85
    %vm120 = vcmp.lt.f32.partialorder %v119, 0.0004427343
    %v121 = vsel %vm120, %v118, %v115
    %v122 = vsub.f32 %v66, %v94
    %v123 = vsub.f32 %v67, %v103
    %v124 = vsub.f32 %v68, %v112
    %v125 = vsub.f32 %v69, %v121
    %v126 = vsub.f32 %v122, %v58
    %v127 = vsub.f32 %v123, %v59
    %v128 = vsub.f32 %v124, %v60
    %v129 = vsub.f32 %v125, %v61
    %v130 = vmul.f32 %v122, 1.442695
    %v131 = vpow.pop %v130
    %v132 = vmul.f32 %v123, 1.442695
    %v133 = vpow.pop %v132
    %v134 = vmul.f32 %v124, 1.442695
    %v135 = vpow.pop %v134
    %v136 = vmul.f32 %v125, 1.442695
    %v137 = vpow.pop %v136
    %v138 = vld [vmem:[#allocation2] sm:$0xff]
    %v139 = vld [vmem:[#allocation2 + $0x8] sm:$0xff]
    %v140 = vld [vmem:[#allocation2 + $0x10] sm:$0xff]
    %v141 = vld [vmem:[#allocation2 + $0x18] sm:$0xff]
    %v142 = vsub.f32 1.0, %v131
    %v143 = vsub.f32 1.0, %v133
    %v144 = vsub.f32 1.0, %v135
    %v145 = vsub.f32 1.0, %v137
    %v146 = vmul.f32 %v142, -2.0
    %v147 = vmul.f32 %v143, -2.0
    %v148 = vmul.f32 %v144, -2.0
    %v149 = vmul.f32 %v145, -2.0
    %v150 = vmul.f32 %v146, %v62
    %v151 = vmul.f32 %v147, %v63
    %v152 = vmul.f32 %v148, %v64
    %v153 = vmul.f32 %v149, %v65
    %v154 = vmul.f32 %v150, %v122
    %v155 = vmul.f32 %v151, %v123
    %v156 = vmul.f32 %v152, %v124
    %v157 = vmul.f32 %v153, %v125
    %v158 = vsub.f32 1.0, %v62
    %v159 = vsub.f32 1.0, %v63
    %v160 = vsub.f32 1.0, %v64
    %v161 = vsub.f32 1.0, %v65
    %v162 = vmul.f32 %v131, %v158
    %v163 = vmul.f32 %v133, %v159
    %v164 = vmul.f32 %v135, %v160
    %v165 = vmul.f32 %v137, %v161
    %v166 = vmul.f32 %v162, %v126
    %v167 = vmul.f32 %v163, %v127
    %v168 = vmul.f32 %v164, %v128
    %v169 = vmul.f32 %v165, %v129
    %v170 = vsub.f32 %v154, %v166
    %v171 = vsub.f32 %v155, %v167
    %v172 = vsub.f32 %v156, %v168
    %v173 = vsub.f32 %v157, %v169
    %v174 = vadd.f32 %v138, %v170
    %v175 = vadd.f32 %v139, %v171
    %v176 = vadd.f32 %v140, %v172
    %v177 = vadd.f32 %v141, %v173
    %178 = vst [vmem:[#allocation2] sm:$0xff] %v174
    %179 = vst [vmem:[#allocation2 + $0x8] sm:$0xff] %v175
    %180 = vst [vmem:[#allocation2 + $0x10] sm:$0xff] %v176
    %181 = vst [vmem:[#allocation2 + $0x18] sm:$0xff] %v177
    // Predicated region
    $region22: #{tpu_custom_call.1} parent=1 // pred_check
      %p182 = pneg %p50
    $region23: #{tpu_custom_call.1} parent=1 // pred_check_branch
      %184 = sbr.rel (%p182) target = $region25
    $region24: #{tpu_custom_call.1} parent=1 // pred_region
      %v185 = vld [vmem:[#allocation2] sm:$0xff]
      %v186 = vld [vmem:[#allocation2 + $0x8] sm:$0xff]
      %v187 = vld [vmem:[#allocation2 + $0x10] sm:$0xff]
      %v188 = vld [vmem:[#allocation2 + $0x18] sm:$0xff]
      %v189 = vadd.f32 %v185, %v186
      %v190 = vadd.f32 %v189, %v187
      %v191 = vadd.f32 %v190, %v188
      %192 = vadd.xlane.f32.xlu0 %v191
      %v193 = vpop.xlane.xlu0 %192
      %v194 = vrot.slane %v193, 4
      %v195 = vadd.f32 %v193, %v194
      %v196 = vrot.slane %v195, 2
      %v197 = vadd.f32 %v195, %v196
      %v198 = vrot.slane %v197, 1
      %v199 = vadd.f32 %v197, %v198
      %s200 = vtos %v199
      %v201 = vstv %s200
      %v202 = vmul.f32 %v201, 0.125
      %vm203 = vcmask 0
      %204 = vst.msk [vmem:[#allocation8] sm:$0x1] %vm203, %v202
    $region25: #{tpu_custom_call.1} parent=1 // pred_fallthru
      _
    // Predicated region
    $region26: #{tpu_custom_call.1} parent=1 // pred_check
      _
    $region27: #{tpu_custom_call.1} parent=1 // pred_check_branch
      %206 = sbr.rel (0) target = $region29
    $region28: #{tpu_custom_call.1} parent=1 // pred_region
      %208 = vsyncadd [#allocation5], 0
      %s210 = sshll.u32 [#allocation8], 4
      %s211 = int_to_ptr.vmem [resolvable:$true] %s210
      %s212 = sshll.u32 %s2, 4
      %s213 = int_to_ptr.hbm [resolvable:$true] %s212
      %215 = dma.vmem_to_hbm [thread:$0]  %s211, 16, %s213, [#allocation5]
    $region29: #{tpu_custom_call.1} parent=1 // pred_fallthru
      _
    // Predicated region
    $region30: #{tpu_custom_call.1} parent=1 // pred_check
      _
    $region31: #{tpu_custom_call.1} parent=1 // pred_check_branch
      %217 = sbr.rel (0) target = $region33
    $region32: #{tpu_custom_call.1} parent=1 // pred_region
      %219 = dma.done [#allocation5], 16
    $region33: #{tpu_custom_call.1} parent=1 // pred_fallthru
      _
    %220 = vsyncpa [#allocation4], 1
    %221 = vsyncpa [#allocation7], 1
    %222 = vsyncpa [#allocation5], 1

</llo_original>
